<compile_context>
chip_gen: v7x
topology: tpu7x:2x2x1
jax: 0.10.0
libtpu: 0.0.40
codegen_flags: <defaults>
</compile_context>

<pallas_src>
import jax
import jax.numpy as jnp
from jax import lax
from jax.experimental import pallas as pl
from jax.experimental.pallas import tpu as pltpu


def _lora_linear_kernel(x_ref, wt_ref, xd_ref, u_ref, b_ref, o_ref, acc_ref):
    k = pl.program_id(2)

    @pl.when(k == 0)
    def _init():
        acc_ref[...] = jnp.zeros_like(acc_ref)

    # Main streamed GEMM: (tm, tk) @ (tk, tn) -> f32 accumulator (MXU).
    acc_ref[...] += jnp.dot(x_ref[...], wt_ref[...],
                            preferred_element_type=jnp.float32)

    @pl.when(k == pl.num_programs(2) - 1)
    def _finalize():
        # Tiny rank-r correction, done once per (i, j) output tile:
        # (tm, r) x (tn, r) contracted on r -> (tm, tn).  `u` already carries
        # the alpha scale.
        lora = lax.dot_general(xd_ref[...], u_ref[...],
                               (((1,), (1,)), ((), ())),
                               preferred_element_type=jnp.float32)
        o_ref[...] = (acc_ref[...] + lora + b_ref[...]).astype(o_ref.dtype)


def _round_up(v, m):
    return (v + m - 1) // m * m


def _tile_and_pad(dim, cap, align):
    """Pick a tile size (multiple of `align`, <= cap) and the padded dim
    (a multiple of the tile).  Never falls back to an unbounded full dim."""
    cap = max(align, (cap // align) * align)
    tile = _round_up(dim, align) if dim <= cap else cap
    return tile, _round_up(dim, tile)


def lora_linear(x, original_weights, lora_up, lora_down, lora_sparse,
                original_bias, alpha, *, tm=512, tn=512, tk=1024,
                compute_dtype=None):
    """x: (..., in_features) -> (..., out_features).

    compute_dtype: dtype fed to the MXU for the big x / W streams
    (e.g. jnp.bfloat16 for the fast path).  Accumulation is always f32.
    """
    orig_dtype = x.dtype
    if compute_dtype is None:
        compute_dtype = orig_dtype

    batch_shape = x.shape[:-1]
    in_f = x.shape[-1]
    out_f = original_weights.shape[0]
    x2 = x.reshape(-1, in_f)
    m = x2.shape[0]

    alpha = jnp.float32(alpha)

    # rank == 0 / missing LoRA factors -> sparse-only path via zero factors.
    if lora_up is None or lora_down is None or lora_down.shape[0] == 0:
        lora_up = jnp.zeros((out_f, 1), jnp.float32)
        lora_down = jnp.zeros((1, in_f), jnp.float32)
    rank = lora_down.shape[0]

    if original_bias is None:
        original_bias = jnp.zeros((out_f,), jnp.float32)

    # ---- one-time XLA prep: fold sparse + alpha, transpose, precompute xd --
    w_eff_t = (original_weights.astype(jnp.float32)
               + alpha * lora_sparse.astype(jnp.float32)).T          # (in, out)
    w_eff_t = w_eff_t.astype(compute_dtype)
    up_scaled = alpha * lora_up.astype(jnp.float32)                  # (out, r)
    x2c = x2.astype(compute_dtype)
    xd = lax.dot_general(x2c, lora_down.astype(compute_dtype),       # (m, r) f32
                         (((1,), (1,)), ((), ())),
                         preferred_element_type=jnp.float32)
    bias2 = original_bias.astype(jnp.float32).reshape(1, out_f)

    # ---- tiling + zero padding to tile multiples ---------------------------
    tm, m_pad = _tile_and_pad(m, tm, 8)
    tn, n_pad = _tile_and_pad(out_f, tn, 128)
    tk, k_pad = _tile_and_pad(in_f, tk, 128)

    x2c = jnp.pad(x2c, ((0, m_pad - m), (0, k_pad - in_f)))
    w_eff_t = jnp.pad(w_eff_t, ((0, k_pad - in_f), (0, n_pad - out_f)))
    xd = jnp.pad(xd, ((0, m_pad - m), (0, 0)))
    up_scaled = jnp.pad(up_scaled, ((0, n_pad - out_f), (0, 0)))
    bias2 = jnp.pad(bias2, ((0, 0), (0, n_pad - out_f)))

    grid = (m_pad // tm, n_pad // tn, k_pad // tk)

    grid_spec = pltpu.PrefetchScalarGridSpec(
        num_scalar_prefetch=0,
        grid=grid,
        in_specs=[
            pl.BlockSpec((tm, tk), lambda i, j, k: (i, k)),     # x
            pl.BlockSpec((tk, tn), lambda i, j, k: (k, j)),     # W_eff.T (K, N)
            pl.BlockSpec((tm, rank), lambda i, j, k: (i, 0)),   # xd = x @ down.T
            pl.BlockSpec((tn, rank), lambda i, j, k: (j, 0)),   # alpha * up
            pl.BlockSpec((1, tn), lambda i, j, k: (0, j)),      # bias
        ],
        out_specs=pl.BlockSpec((tm, tn), lambda i, j, k: (i, j)),
        scratch_shapes=[pltpu.VMEM((tm, tn), jnp.float32)],     # f32 accumulator
    )

    out = pl.pallas_call(
        _lora_linear_kernel,
        out_shape=jax.ShapeDtypeStruct((m_pad, n_pad), orig_dtype),
        grid_spec=grid_spec,
        compiler_params=pltpu.CompilerParams(
            dimension_semantics=("parallel", "parallel", "arbitrary"),
            # 48 MiB: safe on v7x (64 MiB physical per TC); v5e/v6e (128 MiB)
            # can raise this further when sweeping even larger tiles.
            vmem_limit_bytes=48 * 1024 * 1024,
        ),
    )(x2c, w_eff_t, xd, up_scaled, bias2)

    return out[:m, :out_f].reshape(*batch_shape, out_f)


def reference(x, w, up, down, sparse, bias, alpha):
    new_w = w + alpha * (up @ down + sparse)
    return x @ new_w.T + bias


if __name__ == "__main__":
    # Small shapes implied by the Linear forward: (batch, seq, in_features).
    batch, seq, in_features, out_features, rank = 2, 8, 256, 256, 4
    alpha = 1.0

    key = jax.random.PRNGKey(0)
    kx, kw, kb, kdown, kup, ksparse = jax.random.split(key, 6)

    x = jax.random.normal(kx, (batch, seq, in_features), dtype=jnp.float32)
    original_weights = jax.random.normal(
        kw, (out_features, in_features), dtype=jnp.float32) * 0.05
    original_bias = jax.random.normal(kb, (out_features,), dtype=jnp.float32) * 0.05
    lora_down = jax.random.normal(
        kdown, (rank, in_features), dtype=jnp.float32) * (1.0 / rank)
    lora_up = jax.random.normal(kup, (out_features, rank), dtype=jnp.float32) * 0.02
    lora_sparse = jax.random.normal(
        ksparse, (out_features, in_features), dtype=jnp.float32) * 0.01

    y_ref = reference(x, original_weights, lora_up, lora_down, lora_sparse,
                      original_bias, alpha)

    # 1) f32 path, default (large-tile) config -> numerically exact vs reference.
    y = lora_linear(x, original_weights, lora_up, lora_down, lora_sparse,
                    original_bias, alpha)
    y = jax.block_until_ready(y)
    assert y.shape == (batch, seq, out_features), y.shape
    assert jnp.allclose(y, y_ref, atol=1e-4, rtol=1e-4), "f32 mismatch"

    # 2) f32 path with small tiles -> exercises a real multi-block grid
    #    (grid = (2, 2, 2)): K accumulation, output residency and padding.
    y_small = lora_linear(x, original_weights, lora_up, lora_down, lora_sparse,
                          original_bias, alpha, tm=8, tn=128, tk=128)
    y_small = jax.block_until_ready(y_small)
    assert jnp.allclose(y_small, y_ref, atol=1e-4, rtol=1e-4), "tiled mismatch"

    # 3) bf16 MXU feed (perf path), f32 accumulation -> loose tolerance.
    y_bf16 = lora_linear(x, original_weights, lora_up, lora_down, lora_sparse,
                         original_bias, alpha, compute_dtype=jnp.bfloat16)
    y_bf16 = jax.block_until_ready(y_bf16)
    assert jnp.allclose(y_bf16.astype(jnp.float32), y_ref,
                        atol=5e-2, rtol=5e-2), "bf16 mismatch"

    print("KERNEL_OK")
</pallas_src>

<mosaic_0001>
module attributes {stable_mosaic.version = 11 : i64} {
  func.func @_lora_linear_kernel(%arg0: i32, %arg1: i32, %arg2: i32, %arg3: memref<16x256xf32, #tpu.memory_space<vmem>>, %arg4: memref<256x256xf32, #tpu.memory_space<vmem>>, %arg5: memref<16x4xf32, #tpu.memory_space<vmem>>, %arg6: memref<256x4xf32, #tpu.memory_space<vmem>>, %arg7: memref<1x256xf32, #tpu.memory_space<vmem>>, %arg8: memref<16x256xf32, #tpu.memory_space<vmem>>, %arg9: memref<16x256xf32, #tpu.memory_space<vmem>>) attributes {dimension_semantics = [#tpu.dimension_semantics<parallel>, #tpu.dimension_semantics<parallel>, #tpu.dimension_semantics<arbitrary>], iteration_bounds = array<i64: 1, 1, 1>, scalar_prefetch = 0 : i64, scratch_operands = 1 : i64, tpu.core_type = #tpu.core_type<tc>, window_params = [{transform_indices = @transform_0, window_bounds = array<i64: 16, 256>}, {transform_indices = @transform_1, window_bounds = array<i64: 256, 256>}, {transform_indices = @transform_2, window_bounds = array<i64: 16, 4>}, {transform_indices = @transform_3, window_bounds = array<i64: 256, 4>}, {transform_indices = @transform_4, window_bounds = array<i64: 1, 256>}, {transform_indices = @transform_5, window_bounds = array<i64: 16, 256>}]} {
    %c0_i32 = arith.constant 0 : i32
    %0 = arith.cmpi eq, %arg2, %c0_i32 : i32
    %1 = arith.extui %0 : i1 to i32
    %c0_i32_0 = arith.constant 0 : i32
    %2 = arith.cmpi ne, %1, %c0_i32_0 : i32
    scf.if %2 {
      %cst_10 = arith.constant 0.000000e+00 : f32
      %12 = vector.broadcast %cst_10 : f32 to vector<16x256xf32>
      %c0_11 = arith.constant 0 : index
      %c0_12 = arith.constant 0 : index
      %13 = vector.load %arg9[%c0_11, %c0_12] : memref<16x256xf32, #tpu.memory_space<vmem>>, vector<16x256xf32>
      tpu.vector_store %arg9[%c0_11, %c0_12], %12 {strides = array<i32>} : memref<16x256xf32, #tpu.memory_space<vmem>>, vector<16x256xf32>,
    } else {
    }
    %c0 = arith.constant 0 : index
    %c0_1 = arith.constant 0 : index
    %3 = vector.load %arg9[%c0, %c0_1] : memref<16x256xf32, #tpu.memory_space<vmem>>, vector<16x256xf32>
    %c0_2 = arith.constant 0 : index
    %c0_3 = arith.constant 0 : index
    %4 = vector.load %arg3[%c0_2, %c0_3] : memref<16x256xf32, #tpu.memory_space<vmem>>, vector<16x256xf32>
    %c0_4 = arith.constant 0 : index
    %c0_5 = arith.constant 0 : index
    %5 = vector.load %arg4[%c0_4, %c0_5] : memref<256x256xf32, #tpu.memory_space<vmem>>, vector<256x256xf32>
    %cst = arith.constant dense<0.000000e+00> : vector<16x256xf32>
    %6 = tpu.matmul %4, %5, %cst {dimension_numbers = #tpu.dot_dimension_numbers<[1], [0], [0], [1], [0, 0, 1, 1], [], []>} : vector<16x256xf32>, vector<256x256xf32>, vector<16x256xf32> -> vector<16x256xf32>
    %7 = arith.addf %3, %6 : vector<16x256xf32>
    %c0_6 = arith.constant 0 : index
    %c0_7 = arith.constant 0 : index
    %8 = vector.load %arg9[%c0_6, %c0_7] : memref<16x256xf32, #tpu.memory_space<vmem>>, vector<16x256xf32>
    tpu.vector_store %arg9[%c0_6, %c0_7], %7 {strides = array<i32>} : memref<16x256xf32, #tpu.memory_space<vmem>>, vector<16x256xf32>,
    %c0_i32_8 = arith.constant 0 : i32
    %9 = arith.cmpi eq, %arg2, %c0_i32_8 : i32
    %10 = arith.extui %9 : i1 to i32
    %c0_i32_9 = arith.constant 0 : i32
    %11 = arith.cmpi ne, %10, %c0_i32_9 : i32
    scf.if %11 {
      %c0_10 = arith.constant 0 : index
      %c0_11 = arith.constant 0 : index
      %12 = vector.load %arg5[%c0_10, %c0_11] : memref<16x4xf32, #tpu.memory_space<vmem>>, vector<16x4xf32>
      %c0_12 = arith.constant 0 : index
      %c0_13 = arith.constant 0 : index
      %13 = vector.load %arg6[%c0_12, %c0_13] : memref<256x4xf32, #tpu.memory_space<vmem>>, vector<256x4xf32>
      %cst_14 = arith.constant dense<0.000000e+00> : vector<16x256xf32>
      %14 = tpu.matmul %12, %13, %cst_14 {dimension_numbers = #tpu.dot_dimension_numbers<[1], [1], [0], [0], [0, 0, 1, 0], [], []>} : vector<16x4xf32>, vector<256x4xf32>, vector<16x256xf32> -> vector<16x256xf32>
      %c0_15 = arith.constant 0 : index
      %c0_16 = arith.constant 0 : index
      %15 = vector.load %arg9[%c0_15, %c0_16] : memref<16x256xf32, #tpu.memory_space<vmem>>, vector<16x256xf32>
      %16 = arith.addf %15, %14 : vector<16x256xf32>
      %c0_17 = arith.constant 0 : index
      %c0_18 = arith.constant 0 : index
      %17 = vector.load %arg7[%c0_17, %c0_18] : memref<1x256xf32, #tpu.memory_space<vmem>>, vector<1x256xf32>
      %18 = vector.broadcast %17 : vector<1x256xf32> to vector<16x256xf32>
      %19 = arith.addf %16, %18 : vector<16x256xf32>
      %c0_19 = arith.constant 0 : index
      %c0_20 = arith.constant 0 : index
      %20 = vector.load %arg8[%c0_19, %c0_20] : memref<16x256xf32, #tpu.memory_space<vmem>>, vector<16x256xf32>
      tpu.vector_store %arg8[%c0_19, %c0_20], %19 {strides = array<i32>} : memref<16x256xf32, #tpu.memory_space<vmem>>, vector<16x256xf32>,
    } else {
    }
    return
  }
  func.func @transform_0(%arg0: i32, %arg1: i32, %arg2: i32) -> (i32, i32) {
    %c0_i32 = arith.constant 0 : i32
    return %arg0, %arg2 : i32, i32
  }
  func.func @transform_1(%arg0: i32, %arg1: i32, %arg2: i32) -> (i32, i32) {
    %c0_i32 = arith.constant 0 : i32
    return %arg2, %arg1 : i32, i32
  }
  func.func @transform_2(%arg0: i32, %arg1: i32, %arg2: i32) -> (i32, i32) {
    %c0_i32 = arith.constant 0 : i32
    %c0_i32_0 = arith.constant 0 : i32
    return %arg0, %c0_i32 : i32, i32
  }
  func.func @transform_3(%arg0: i32, %arg1: i32, %arg2: i32) -> (i32, i32) {
    %c0_i32 = arith.constant 0 : i32
    %c0_i32_0 = arith.constant 0 : i32
    return %arg1, %c0_i32 : i32, i32
  }
  func.func @transform_4(%arg0: i32, %arg1: i32, %arg2: i32) -> (i32, i32) {
    %c0_i32 = arith.constant 0 : i32
    %c0_i32_0 = arith.constant 0 : i32
    return %c0_i32, %arg1 : i32, i32
  }
  func.func @transform_5(%arg0: i32, %arg1: i32, %arg2: i32) -> (i32, i32) {
    %c0_i32 = arith.constant 0 : i32
    return %arg0, %arg1 : i32, i32
  }
}

</mosaic_0001>

<llo_original>
// kernel: tpu_custom_call.1
$region0: #{tpu_custom_call.1}
  #allocation0 [shape = 'u32[]', space=smem, size = 0x4, offset = 0x4, fixed_abs, tag = 'smem constant byte address 0x4 - core index']
  #allocation1 [shape = 'u32[144,128]{1,0:T(1,128)}', space=vmem, size = 0x12000, scoped, tag = 'internal scratch']
  #allocation2 [shape = 'f32[16,256]{1,0:T(8,128)}', space=vmem, size = 0x4000, scoped, tag = 'scratch operand']
  %s0 = inlined_call_operand.vmem [shape: f32[16,256], index: 0, kind: input, shape index: {}]
  %s1 = inlined_call_operand.hbm [shape: f32[256,256], index: 1, kind: input, shape index: {}]
  %s2 = inlined_call_operand.vmem [shape: f32[16,4], index: 2, kind: input, shape index: {}]
  %s3 = inlined_call_operand.vmem [shape: f32[256,4], index: 3, kind: input, shape index: {}]
  %s4 = inlined_call_operand.vmem [shape: f32[1,256], index: 4, kind: input, shape index: {}]
  %s5 = inlined_call_operand.hbm [shape: f32[16,256], index: 5, kind: output, shape index: {}]
  %s6 = sld [smem:[#allocation0]]
  $region42: #{tpu_custom_call.1} parent=0
    _
  %s8 = ssub.s32 1, %s6
  %s9 = scalar_select 0, %s8, %s6
  $region1: #{tpu_custom_call.1} parent=0
    #allocation3 [shape = 'u8[262144]{0}', space=vmem, size = 0x40000, scoped, tag = 'input window, operand 1, single buffered']
    #allocation4 [shape = 's32[1]{0}', space=sflag, size = 0x4, scoped, tag = 'scoped memory for tpu_custom_call.1']
    #allocation5 [shape = 's32[1]{0}', space=sflag, size = 0x4, scoped, tag = 'scoped memory for tpu_custom_call.1']
    #allocation6 [shape = 'u8[16384]{0}', space=vmem, size = 0x4000, scoped, tag = 'output window, operand 0, single buffered']
    %10 = vsyncpa [#allocation4], 0
    %11 = vsyncpa [#allocation5], 0
    // Predicated region
    $region2: #{tpu_custom_call.1} parent=1 // pred_check
      _
    $region3: #{tpu_custom_call.1} parent=1 // pred_check_branch
      %13 = sbr.rel (0) target = $region5
    $region4: #{tpu_custom_call.1} parent=1 // pred_region
      _
    $region5: #{tpu_custom_call.1} parent=1 // pred_fallthru
      _
    // Predicated region
    $region6: #{tpu_custom_call.1} parent=1 // pred_check
      _
    $region7: #{tpu_custom_call.1} parent=1 // pred_check_branch
      %15 = sbr.rel (0) target = $region9
    $region8: #{tpu_custom_call.1} parent=1 // pred_region
      %s17 = ssub.s32 8192, 8192
      %18 = vsyncadd [#allocation4], %s17
      %s19 = sshll.u32 [#allocation3], 4
      %s20 = int_to_ptr.vmem [resolvable:$true] %s19
      %25 = dma.hbm_to_vmem [thread:$0]  %s1, 8192, %s20, [#allocation4], 256, 256, 16
    $region9: #{tpu_custom_call.1} parent=1 // pred_fallthru
      _
    // Predicated region
    $region10: #{tpu_custom_call.1} parent=1 // pred_check
      _
    $region11: #{tpu_custom_call.1} parent=1 // pred_check_branch
      %27 = sbr.rel (0) target = $region13
    $region12: #{tpu_custom_call.1} parent=1 // pred_region
      _
    $region13: #{tpu_custom_call.1} parent=1 // pred_fallthru
      _
    // Predicated region
    $region14: #{tpu_custom_call.1} parent=1 // pred_check
      _
    $region15: #{tpu_custom_call.1} parent=1 // pred_check_branch
      %29 = sbr.rel (0) target = $region17
    $region16: #{tpu_custom_call.1} parent=1 // pred_region
      _
    $region17: #{tpu_custom_call.1} parent=1 // pred_fallthru
      _
    // Predicated region
    $region18: #{tpu_custom_call.1} parent=1 // pred_check
      _
    $region19: #{tpu_custom_call.1} parent=1 // pred_check_branch
      %31 = sbr.rel (0) target = $region21
    $region20: #{tpu_custom_call.1} parent=1 // pred_region
      _
    $region21: #{tpu_custom_call.1} parent=1 // pred_fallthru
      _
    // Predicated region
    $region22: #{tpu_custom_call.1} parent=1 // pred_check
      _
    $region23: #{tpu_custom_call.1} parent=1 // pred_check_branch
      %33 = sbr.rel (0) target = $region25
    $region24: #{tpu_custom_call.1} parent=1 // pred_region
      %34 = dma.done [#allocation4], 8192
    $region25: #{tpu_custom_call.1} parent=1 // pred_fallthru
      _
    %p35 = scmp.eq.s32.totalorder 0, 0
    // Predicated region
    $region26: #{tpu_custom_call.1} parent=1 // pred_check
      %p36 = pneg %p35
    $region27: #{tpu_custom_call.1} parent=1 // pred_check_branch
      %38 = sbr.rel (%p36) target = $region29
    $region28: #{tpu_custom_call.1} parent=1 // pred_region
      %39 = vst [vmem:[#allocation2] sm:$0xff] 0.0
      %40 = vst [vmem:[#allocation2 + $0x8] sm:$0xff] 0.0
      %41 = vst [vmem:[#allocation2 + $0x10] sm:$0xff] 0.0
      %42 = vst [vmem:[#allocation2 + $0x18] sm:$0xff] 0.0
    $region29: #{tpu_custom_call.1} parent=1 // pred_fallthru
      _
    %v43 = vld [vmem:[#allocation2] sm:$0xff]
    %v44 = vld [vmem:[#allocation2 + $0x8] sm:$0xff]
    %v45 = vld [vmem:[#allocation2 + $0x10] sm:$0xff]
    %v46 = vld [vmem:[#allocation2 + $0x18] sm:$0xff]
    %v47 = vld [vmem:[%s0] sm:$0xff]
    %v48 = vld [vmem:[%s0 + $0x8] sm:$0xff]
    %v49 = vld [vmem:[%s0 + $0x10] sm:$0xff]
    %v50 = vld [vmem:[%s0 + $0x18] sm:$0xff]
    %v51 = vld [vmem:[#allocation3] sm:$0xff]
    %v52 = vld [vmem:[#allocation3 + $0x8] sm:$0xff]
    %v53 = vld [vmem:[#allocation3 + $0x10] sm:$0xff]
    %v54 = vld [vmem:[#allocation3 + $0x18] sm:$0xff]
    %v55 = vld [vmem:[#allocation3 + $0x20] sm:$0xff]
    %v56 = vld [vmem:[#allocation3 + $0x28] sm:$0xff]
    %v57 = vld [vmem:[#allocation3 + $0x30] sm:$0xff]
    %v58 = vld [vmem:[#allocation3 + $0x38] sm:$0xff]
    %v59 = vld [vmem:[#allocation3 + $0x40] sm:$0xff]
    %v60 = vld [vmem:[#allocation3 + $0x48] sm:$0xff]
    %v61 = vld [vmem:[#allocation3 + $0x50] sm:$0xff]
    %v62 = vld [vmem:[#allocation3 + $0x58] sm:$0xff]
    %v63 = vld [vmem:[#allocation3 + $0x60] sm:$0xff]
    %v64 = vld [vmem:[#allocation3 + $0x68] sm:$0xff]
    %v65 = vld [vmem:[#allocation3 + $0x70] sm:$0xff]
    %v66 = vld [vmem:[#allocation3 + $0x78] sm:$0xff]
    %v67 = vld [vmem:[#allocation3 + $0x80] sm:$0xff]
    %v68 = vld [vmem:[#allocation3 + $0x88] sm:$0xff]
    %v69 = vld [vmem:[#allocation3 + $0x90] sm:$0xff]
    %v70 = vld [vmem:[#allocation3 + $0x98] sm:$0xff]
    %v71 = vld [vmem:[#allocation3 + $0xa0] sm:$0xff]
    %v72 = vld [vmem:[#allocation3 + $0xa8] sm:$0xff]
    %v73 = vld [vmem:[#allocation3 + $0xb0] sm:$0xff]
    %v74 = vld [vmem:[#allocation3 + $0xb8] sm:$0xff]
    %v75 = vld [vmem:[#allocation3 + $0xc0] sm:$0xff]
    %v76 = vld [vmem:[#allocation3 + $0xc8] sm:$0xff]
    %v77 = vld [vmem:[#allocation3 + $0xd0] sm:$0xff]
    %v78 = vld [vmem:[#allocation3 + $0xd8] sm:$0xff]
    %v79 = vld [vmem:[#allocation3 + $0xe0] sm:$0xff]
    %v80 = vld [vmem:[#allocation3 + $0xe8] sm:$0xff]
    %v81 = vld [vmem:[#allocation3 + $0xf0] sm:$0xff]
    %v82 = vld [vmem:[#allocation3 + $0xf8] sm:$0xff]
    %v83 = vld [vmem:[#allocation3 + $0x100] sm:$0xff]
    %v84 = vld [vmem:[#allocation3 + $0x108] sm:$0xff]
    %v85 = vld [vmem:[#allocation3 + $0x110] sm:$0xff]
    %v86 = vld [vmem:[#allocation3 + $0x118] sm:$0xff]
    %v87 = vld [vmem:[#allocation3 + $0x120] sm:$0xff]
    %v88 = vld [vmem:[#allocation3 + $0x128] sm:$0xff]
    %v89 = vld [vmem:[#allocation3 + $0x130] sm:$0xff]
    %v90 = vld [vmem:[#allocation3 + $0x138] sm:$0xff]
    %v91 = vld [vmem:[#allocation3 + $0x140] sm:$0xff]
    %v92 = vld [vmem:[#allocation3 + $0x148] sm:$0xff]
    %v93 = vld [vmem:[#allocation3 + $0x150] sm:$0xff]
    %v94 = vld [vmem:[#allocation3 + $0x158] sm:$0xff]
    %v95 = vld [vmem:[#allocation3 + $0x160] sm:$0xff]
    %v96 = vld [vmem:[#allocation3 + $0x168] sm:$0xff]
    %v97 = vld [vmem:[#allocation3 + $0x170] sm:$0xff]
    %v98 = vld [vmem:[#allocation3 + $0x178] sm:$0xff]
    %v99 = vld [vmem:[#allocation3 + $0x180] sm:$0xff]
    %v100 = vld [vmem:[#allocation3 + $0x188] sm:$0xff]
    %v101 = vld [vmem:[#allocation3 + $0x190] sm:$0xff]
    %v102 = vld [vmem:[#allocation3 + $0x198] sm:$0xff]
    %v103 = vld [vmem:[#allocation3 + $0x1a0] sm:$0xff]
    %v104 = vld [vmem:[#allocation3 + $0x1a8] sm:$0xff]
    %v105 = vld [vmem:[#allocation3 + $0x1b0] sm:$0xff]
    %v106 = vld [vmem:[#allocation3 + $0x1b8] sm:$0xff]
    %v107 = vld [vmem:[#allocation3 + $0x1c0] sm:$0xff]
    %v108 = vld [vmem:[#allocation3 + $0x1c8] sm:$0xff]
    %v109 = vld [vmem:[#allocation3 + $0x1d0] sm:$0xff]
    %v110 = vld [vmem:[#allocation3 + $0x1d8] sm:$0xff]
    %v111 = vld [vmem:[#allocation3 + $0x1e0] sm:$0xff]
    %v112 = vld [vmem:[#allocation3 + $0x1e8] sm:$0xff]
    %v113 = vld [vmem:[#allocation3 + $0x1f0] sm:$0xff]
    %v114 = vld [vmem:[#allocation3 + $0x1f8] sm:$0xff]
    %115 = vmatprep.subr.mxu0 %v52
    %116 = vmatpush1.msra.mxu0 %v51
    %117 = vmatprep.subr.mxu0 %v54
    %118 = vmatpush1.msra.mxu0 %v53
    %119 = vmatprep.subr.mxu0 %v56
    %120 = vmatpush1.msra.mxu0 %v55
    %121 = vmatprep.subr.mxu0 %v58
    %122 = vmatpush1.msra.mxu0 %v57
    %123 = vmatprep.subr.mxu0 %v60
    %124 = vmatpush1.msra.mxu0 %v59
    %125 = vmatprep.subr.mxu0 %v62
    %126 = vmatpush1.msra.mxu0 %v61
    %127 = vmatprep.subr.mxu0 %v64
    %128 = vmatpush1.msra.mxu0 %v63
    %129 = vmatprep.subr.mxu0 %v66
    %130 = vmatpush1.msra.mxu0 %v65
    %131 = vmatprep.subr.mxu0 %v68
    %132 = vmatpush1.msra.mxu0 %v67
    %133 = vmatprep.subr.mxu0 %v70
    %134 = vmatpush1.msra.mxu0 %v69
    %135 = vmatprep.subr.mxu0 %v72
    %136 = vmatpush1.msra.mxu0 %v71
    %137 = vmatprep.subr.mxu0 %v74
    %138 = vmatpush1.msra.mxu0 %v73
    %139 = vmatprep.subr.mxu0 %v76
    %140 = vmatpush1.msra.mxu0 %v75
    %141 = vmatprep.subr.mxu0 %v78
    %142 = vmatpush1.msra.mxu0 %v77
    %143 = vmatprep.subr.mxu0 %v80
    %144 = vmatpush1.msra.mxu0 %v79
    %145 = vmatprep.subr.mxu0 %v82
    %146 = vmatpush1.msra.mxu0 %v81
    %147 = vmatprep.subr.mxu0 %v84
    %148 = vmatpush1.msra.mxu0 %v83
    %149 = vmatprep.subr.mxu0 %v86
    %150 = vmatpush1.msra.mxu0 %v85
    %151 = vmatprep.subr.mxu0 %v88
    %152 = vmatpush1.msra.mxu0 %v87
    %153 = vmatprep.subr.mxu0 %v90
    %154 = vmatpush1.msra.mxu0 %v89
    %155 = vmatprep.subr.mxu0 %v92
    %156 = vmatpush1.msra.mxu0 %v91
    %157 = vmatprep.subr.mxu0 %v94
    %158 = vmatpush1.msra.mxu0 %v93
    %159 = vmatprep.subr.mxu0 %v96
    %160 = vmatpush1.msra.mxu0 %v95
    %161 = vmatprep.subr.mxu0 %v98
    %162 = vmatpush1.msra.mxu0 %v97
    %163 = vmatprep.subr.mxu0 %v100
    %164 = vmatpush1.msra.mxu0 %v99
    %165 = vmatprep.subr.mxu0 %v102
    %166 = vmatpush1.msra.mxu0 %v101
    %167 = vmatprep.subr.mxu0 %v104
    %168 = vmatpush1.msra.mxu0 %v103
    %169 = vmatprep.subr.mxu0 %v106
    %170 = vmatpush1.msra.mxu0 %v105
    %171 = vmatprep.subr.mxu0 %v108
    %172 = vmatpush1.msra.mxu0 %v107
    %173 = vmatprep.subr.mxu0 %v110
    %174 = vmatpush1.msra.mxu0 %v109
    %175 = vmatprep.subr.mxu0 %v112
    %176 = vmatpush1.msra.mxu0 %v111
    %177 = vmatprep.subr.mxu0 %v114
    %178 = vmatpush1.msra.mxu0 %v113
    %179 = vmatprep.mubr.f32.mxu0 %v48
    %180 = vmatmul.mubr.f32.gmra.mrb[0].mxu0 %v47
    %v181 = vpop.f32.mrb[0].mxu0
    %v182 = vadd.f32 0.0, %v181
    %v183 = vpop.f32.mrb[0].mxu0
    %v184 = vadd.f32 0.0, %v183
    %185 = vmatprep.mubr.f32.mxu0 %v50
    %186 = vmatmul.mubr.f32.gmra.mrb[0].mxu0 %v49
    %v187 = vpop.f32.mrb[0].mxu0
    %v188 = vadd.f32 0.0, %v187
    %v189 = vpop.f32.mrb[0].mxu0
    %v190 = vadd.f32 0.0, %v189
    %191 = vdwg.mxu0
    %v192 = vadd.f32 %v43, %v182
    %v193 = vadd.f32 %v44, %v184
    %v194 = vadd.f32 %v45, %v188
    %v195 = vadd.f32 %v46, %v190
    %196 = vst [vmem:[#allocation2] sm:$0xff] %v192
    %197 = vst [vmem:[#allocation2 + $0x8] sm:$0xff] %v193
    %198 = vst [vmem:[#allocation2 + $0x10] sm:$0xff] %v194
    %199 = vst [vmem:[#allocation2 + $0x18] sm:$0xff] %v195
    // Predicated region
    $region30: #{tpu_custom_call.1} parent=1 // pred_check
      %p200 = pneg %p35
    $region31: #{tpu_custom_call.1} parent=1 // pred_check_branch
      %202 = sbr.rel (%p200) target = $region33
    $region32: #{tpu_custom_call.1} parent=1 // pred_region
      %v203 = vld [vmem:[%s2] sm:$0xff]
      %v204 = vld [vmem:[%s2 + $0x8] sm:$0xff]
      %v205 = vld [vmem:[%s3] sm:$0xff]
      %v206 = vld [vmem:[%s3 + $0x8] sm:$0xff]
      %v207 = vld [vmem:[%s3 + $0x10] sm:$0xff]
      %v208 = vld [vmem:[%s3 + $0x18] sm:$0xff]
      %v209 = vld [vmem:[%s3 + $0x20] sm:$0xff]
      %v210 = vld [vmem:[%s3 + $0x28] sm:$0xff]
      %v211 = vld [vmem:[%s3 + $0x30] sm:$0xff]
      %v212 = vld [vmem:[%s3 + $0x38] sm:$0xff]
      %v213 = vld [vmem:[%s3 + $0x40] sm:$0xff]
      %v214 = vld [vmem:[%s3 + $0x48] sm:$0xff]
      %v215 = vld [vmem:[%s3 + $0x50] sm:$0xff]
      %v216 = vld [vmem:[%s3 + $0x58] sm:$0xff]
      %v217 = vld [vmem:[%s3 + $0x60] sm:$0xff]
      %v218 = vld [vmem:[%s3 + $0x68] sm:$0xff]
      %v219 = vld [vmem:[%s3 + $0x70] sm:$0xff]
      %v220 = vld [vmem:[%s3 + $0x78] sm:$0xff]
      %v221 = vld [vmem:[%s3 + $0x80] sm:$0xff]
      %v222 = vld [vmem:[%s3 + $0x88] sm:$0xff]
      %v223 = vld [vmem:[%s3 + $0x90] sm:$0xff]
      %v224 = vld [vmem:[%s3 + $0x98] sm:$0xff]
      %v225 = vld [vmem:[%s3 + $0xa0] sm:$0xff]
      %v226 = vld [vmem:[%s3 + $0xa8] sm:$0xff]
      %v227 = vld [vmem:[%s3 + $0xb0] sm:$0xff]
      %v228 = vld [vmem:[%s3 + $0xb8] sm:$0xff]
      %v229 = vld [vmem:[%s3 + $0xc0] sm:$0xff]
      %v230 = vld [vmem:[%s3 + $0xc8] sm:$0xff]
      %v231 = vld [vmem:[%s3 + $0xd0] sm:$0xff]
      %v232 = vld [vmem:[%s3 + $0xd8] sm:$0xff]
      %v233 = vld [vmem:[%s3 + $0xe0] sm:$0xff]
      %v234 = vld [vmem:[%s3 + $0xe8] sm:$0xff]
      %v235 = vld [vmem:[%s3 + $0xf0] sm:$0xff]
      %v236 = vld [vmem:[%s3 + $0xf8] sm:$0xff]
      %vm237 = vcmask 31744
      %v239 = vsel %vm237, %v203, 0
      %v242 = vsel %vm237, %v204, 0
      %v245 = vsel %vm237, %v205, 0
      %v248 = vsel %vm237, %v206, 0
      %v251 = vsel %vm237, %v207, 0
      %v254 = vsel %vm237, %v208, 0
      %v257 = vsel %vm237, %v209, 0
      %v260 = vsel %vm237, %v210, 0
      %v263 = vsel %vm237, %v211, 0
      %v266 = vsel %vm237, %v212, 0
      %v269 = vsel %vm237, %v213, 0
      %v272 = vsel %vm237, %v214, 0
      %v275 = vsel %vm237, %v215, 0
      %v278 = vsel %vm237, %v216, 0
      %v281 = vsel %vm237, %v217, 0
      %v284 = vsel %vm237, %v218, 0
      %v287 = vsel %vm237, %v219, 0
      %v290 = vsel %vm237, %v220, 0
      %v293 = vsel %vm237, %v221, 0
      %v296 = vsel %vm237, %v222, 0
      %v299 = vsel %vm237, %v223, 0
      %v302 = vsel %vm237, %v224, 0
      %v305 = vsel %vm237, %v225, 0
      %v308 = vsel %vm237, %v226, 0
      %v311 = vsel %vm237, %v227, 0
      %v314 = vsel %vm237, %v228, 0
      %v317 = vsel %vm237, %v229, 0
      %v320 = vsel %vm237, %v230, 0
      %v323 = vsel %vm237, %v231, 0
      %v326 = vsel %vm237, %v232, 0
      %v329 = vsel %vm237, %v233, 0
      %v332 = vsel %vm237, %v234, 0
      %v335 = vsel %vm237, %v235, 0
      %v338 = vsel %vm237, %v236, 0
      %340 = vmatprep.subr.mxu0 0.0
      %341 = vmatpush1.xpose.msra.mxu0 %v245
      %342 = vmatprep.subr.mxu0 0.0
      %343 = vmatpush1.xpose.msra.mxu0 %v248
      %344 = vmatprep.subr.mxu0 0.0
      %345 = vmatpush1.xpose.msra.mxu0 %v251
      %346 = vmatprep.subr.mxu0 0.0
      %347 = vmatpush1.xpose.msra.mxu0 %v254
      %348 = vmatprep.subr.mxu0 0.0
      %349 = vmatpush1.xpose.msra.mxu0 %v257
      %350 = vmatprep.subr.mxu0 0.0
      %351 = vmatpush1.xpose.msra.mxu0 %v260
      %352 = vmatprep.subr.mxu0 0.0
      %353 = vmatpush1.xpose.msra.mxu0 %v263
      %354 = vmatprep.subr.mxu0 0.0
      %355 = vmatpush1.xpose.msra.mxu0 %v266
      %356 = vmatprep.subr.mxu0 0.0
      %357 = vmatpush1.xpose.msra.mxu0 %v269
      %358 = vmatprep.subr.mxu0 0.0
      %359 = vmatpush1.xpose.msra.mxu0 %v272
      %360 = vmatprep.subr.mxu0 0.0
      %361 = vmatpush1.xpose.msra.mxu0 %v275
      %362 = vmatprep.subr.mxu0 0.0
      %363 = vmatpush1.xpose.msra.mxu0 %v278
      %364 = vmatprep.subr.mxu0 0.0
      %365 = vmatpush1.xpose.msra.mxu0 %v281
      %366 = vmatprep.subr.mxu0 0.0
      %367 = vmatpush1.xpose.msra.mxu0 %v284
      %368 = vmatprep.subr.mxu0 0.0
      %369 = vmatpush1.xpose.msra.mxu0 %v287
      %370 = vmatprep.subr.mxu0 0.0
      %371 = vmatpush1.xpose.msra.mxu0 %v290
      %372 = vmatprep.subr.mxu0 0.0
      %373 = vmatpush1.xpose.msra.mxu0 %v293
      %374 = vmatprep.subr.mxu0 0.0
      %375 = vmatpush1.xpose.msra.mxu0 %v296
      %376 = vmatprep.subr.mxu0 0.0
      %377 = vmatpush1.xpose.msra.mxu0 %v299
      %378 = vmatprep.subr.mxu0 0.0
      %379 = vmatpush1.xpose.msra.mxu0 %v302
      %380 = vmatprep.subr.mxu0 0.0
      %381 = vmatpush1.xpose.msra.mxu0 %v305
      %382 = vmatprep.subr.mxu0 0.0
      %383 = vmatpush1.xpose.msra.mxu0 %v308
      %384 = vmatprep.subr.mxu0 0.0
      %385 = vmatpush1.xpose.msra.mxu0 %v311
      %386 = vmatprep.subr.mxu0 0.0
      %387 = vmatpush1.xpose.msra.mxu0 %v314
      %388 = vmatprep.subr.mxu0 0.0
      %389 = vmatpush1.xpose.msra.mxu0 %v317
      %390 = vmatprep.subr.mxu0 0.0
      %391 = vmatpush1.xpose.msra.mxu0 %v320
      %392 = vmatprep.subr.mxu0 0.0
      %393 = vmatpush1.xpose.msra.mxu0 %v323
      %394 = vmatprep.subr.mxu0 0.0
      %395 = vmatpush1.xpose.msra.mxu0 %v326
      %396 = vmatprep.subr.mxu0 0.0
      %397 = vmatpush1.xpose.msra.mxu0 %v329
      %398 = vmatprep.subr.mxu0 0.0
      %399 = vmatpush1.xpose.msra.mxu0 %v332
      %400 = vmatprep.subr.mxu0 0.0
      %401 = vmatpush1.xpose.msra.mxu0 %v335
      %402 = vmatprep.subr.mxu0 0.0
      %403 = vmatpush1.xpose.msra.mxu0 %v338
      %404 = vmatprep.mubr.f32.mxu0 0.0
      %405 = vmatmul.mubr.f32.gmra.mrb[0].mxu0 %v239
      %v406 = vpop.f32.mrb[0].mxu0
      %v407 = vadd.f32 0.0, %v406
      %v408 = vpop.f32.mrb[0].mxu0
      %v409 = vadd.f32 0.0, %v408
      %410 = vmatprep.mubr.f32.mxu0 0.0
      %411 = vmatmul.mubr.f32.gmra.mrb[0].mxu0 %v242
      %v412 = vpop.f32.mrb[0].mxu0
      %v413 = vadd.f32 0.0, %v412
      %v414 = vpop.f32.mrb[0].mxu0
      %v415 = vadd.f32 0.0, %v414
      %416 = vdwg.mxu0
      %v417 = vld [vmem:[#allocation2] sm:$0xff]
      %v418 = vld [vmem:[#allocation2 + $0x8] sm:$0xff]
      %v419 = vld [vmem:[#allocation2 + $0x10] sm:$0xff]
      %v420 = vld [vmem:[#allocation2 + $0x18] sm:$0xff]
      %v421 = vadd.f32 %v417, %v407
      %v422 = vadd.f32 %v418, %v409
      %v423 = vadd.f32 %v419, %v413
      %v424 = vadd.f32 %v420, %v415
      %v425 = vld [vmem:[%s4] sm:$0x3]
      %v427 = vlaneseq
      %v428 = vshrl.u32 %v427, 7
      %v429 = vsub.s32 0, %v428
      %v430 = vrot.slane %v425, %v429
      %v431 = vlaneseq
      %v432 = vshrl.u32 %v431, 7
      %v433 = vsub.s32 1, %v432
      %v434 = vrot.slane %v425, %v433
      %v437 = vadd.f32 %v421, %v430
      %v438 = vadd.f32 %v422, %v434
      %v439 = vadd.f32 %v423, %v430
      %v440 = vadd.f32 %v424, %v434
      %441 = vst [vmem:[#allocation6] sm:$0xff] %v437
      %442 = vst [vmem:[#allocation6 + $0x8] sm:$0xff] %v438
      %443 = vst [vmem:[#allocation6 + $0x10] sm:$0xff] %v439
      %444 = vst [vmem:[#allocation6 + $0x18] sm:$0xff] %v440
    $region33: #{tpu_custom_call.1} parent=1 // pred_fallthru
      _
    // Predicated region
    $region34: #{tpu_custom_call.1} parent=1 // pred_check
      _
    $region35: #{tpu_custom_call.1} parent=1 // pred_check_branch
      %446 = sbr.rel (0) target = $region37
    $region36: #{tpu_custom_call.1} parent=1 // pred_region
      %s448 = ssub.s32 512, 512
      %449 = vsyncadd [#allocation5], %s448
      %s450 = sshll.u32 [#allocation6], 4
      %s451 = int_to_ptr.vmem [resolvable:$true] %s450
      %456 = dma.vmem_to_hbm [thread:$0]  %s451, 512, %s5, [#allocation5], 256, 256, 16
    $region37: #{tpu_custom_call.1} parent=1 // pred_fallthru
      _
    // Predicated region
    $region38: #{tpu_custom_call.1} parent=1 // pred_check
      _
    $region39: #{tpu_custom_call.1} parent=1 // pred_check_branch
      %458 = sbr.rel (0) target = $region41
    $region40: #{tpu_custom_call.1} parent=1 // pred_region
      %459 = dma.done [#allocation5], 512
    $region41: #{tpu_custom_call.1} parent=1 // pred_fallthru
      _
    %460 = vsyncpa [#allocation4], 1
    %461 = vsyncpa [#allocation5], 1

</llo_original>
